<compile_context>
chip_gen: v6e
topology: v6e:2x2x1
jax: 0.10.0
libtpu: 0.0.40
codegen_flags: <defaults>
</compile_context>

<pallas_src>
import functools

import jax
import jax.numpy as jnp
from jax import lax
from jax.experimental import pallas as pl
from jax.experimental.pallas import tpu as pltpu


def _round_up(x, m):
    return (x + m - 1) // m * m


def _vq_kernel(n_valid, n_padded, x_ref, et_ref, e_ref, e2h_ref,
               q_ref, idx_ref, loss_ref):
    """One tile of columns of the (D, N) transposed activations.

    x_ref   : (D, TN)  tile of activations (channels in sublanes, rows in lanes)
    et_ref  : (K, D)   codebook pre-transposed in the wrapper (rows = codes)
    e_ref   : (D, K)   codebook (embedding_dim x num_embeddings)
    e2h_ref : (K, 1)   0.5 * ||e_k||^2, precomputed in the wrapper
    q_ref   : (D, TN)  quantized activations for this tile
    idx_ref : (1, TN)  int32 encoding indices (lane-dense)
    loss_ref: (1, 1)   per-tile partial sum of (x - q)^2 (reduced in the wrapper)
    """
    i = pl.program_id(0)

    xf = x_ref[...].astype(jnp.float32)          # (D, TN)
    et = et_ref[...].astype(jnp.float32)         # (K, D)
    e = e_ref[...].astype(jnp.float32)           # (D, K)
    e2h = e2h_ref[...]                           # (K, 1)

    k = et.shape[0]
    tn = xf.shape[1]

    # argmin_k ||x - e_k||^2  ==  argmin_k (0.5*||e_k||^2 - x . e_k)
    xe = jnp.dot(et, xf, preferred_element_type=jnp.float32)    # (K, TN) on MXU
    scores = e2h - xe                                           # (K, TN)

    # argmin over codes (sublane axis), first-minimum tie-break like argmin.
    mins = jnp.min(scores, axis=0, keepdims=True)               # (1, TN)
    k_iota = lax.broadcasted_iota(jnp.int32, (k, tn), 0)        # (K, TN)
    idx = jnp.min(jnp.where(scores == mins, k_iota, k),
                  axis=0, keepdims=True).astype(jnp.int32)      # (1, TN)
    idx_ref[...] = idx

    # Codebook gather as one-hot matmul (MXU), no in-kernel transpose.
    onehot = (k_iota == idx).astype(jnp.float32)                # (K, TN)
    q = jnp.dot(e, onehot, preferred_element_type=jnp.float32)  # (D, TN) on MXU
    q_ref[...] = q.astype(q_ref.dtype)

    # Per-tile partial squared error (same forward value for dictionary & commitment
    # losses; only autograd routing differs in PyTorch).
    diff = xf - q
    sq = diff * diff
    if n_padded != n_valid:  # static Python branch: mask zero-padded tail columns
        col = lax.broadcasted_iota(jnp.int32, (1, tn), 1) + i * tn
        sq = sq * (col < n_valid).astype(sq.dtype)
    loss_ref[...] = jnp.sum(sq).reshape(1, 1)


@functools.partial(jax.jit, static_argnames=("tile_n",))
def vector_quantizer_forward(x_nchw, e_i_ts, tile_n=2048):
    """Forward pass of VectorQuantizer (use_ema=False, eval mode).

    Returns (quantized_x [NCHW], dictionary_loss, commitment_loss,
             encoding_indices [B, H, W]).
    """
    B, C, H, W = x_nchw.shape
    D, K = e_i_ts.shape
    assert C == D

    N = B * H * W
    tile = _round_up(min(tile_n, _round_up(N, 128)), 128)
    N_pad = _round_up(N, tile)
    num_tiles = N_pad // tile

    # (D, N) layout with N index = b*H*W + h*W + w — same row ordering as PyTorch's
    # permute(0,2,3,1).reshape(-1, D), but with a dense (H*W) minor dim for the DMA.
    x_t = jnp.transpose(x_nchw, (1, 0, 2, 3)).reshape(D, N)
    if N_pad != N:
        x_t = jnp.pad(x_t, ((0, 0), (0, N_pad - N)))

    e = e_i_ts.astype(jnp.float32)
    e_t = jnp.transpose(e)                           # (K, D), hoisted out of the grid
    e2_half = 0.5 * jnp.sum(e * e, axis=0)[:, None]  # (K, 1), hoisted out of the grid

    kernel = functools.partial(_vq_kernel, N, N_pad)

    q_t, idx_tiles, loss_parts = pl.pallas_call(
        kernel,
        out_shape=(
            jax.ShapeDtypeStruct((D, N_pad), x_nchw.dtype),
            jax.ShapeDtypeStruct((num_tiles, tile), jnp.int32),
            jax.ShapeDtypeStruct((num_tiles, 1), jnp.float32),
        ),
        grid_spec=pltpu.PrefetchScalarGridSpec(
            num_scalar_prefetch=0,
            grid=(num_tiles,),
            in_specs=[
                pl.BlockSpec((D, tile), lambda i: (0, i)),   # activations tile
                pl.BlockSpec((K, D), lambda i: (0, 0)),      # codebook^T (constant)
                pl.BlockSpec((D, K), lambda i: (0, 0)),      # codebook (constant)
                pl.BlockSpec((K, 1), lambda i: (0, 0)),      # 0.5*||e_k||^2 (constant)
            ],
            out_specs=[
                pl.BlockSpec((D, tile), lambda i: (0, i)),   # quantized tile
                pl.BlockSpec((1, tile), lambda i: (i, 0)),   # indices (lane-dense)
                pl.BlockSpec((1, 1), lambda i: (i, 0)),      # per-tile loss partial
            ],
        ),
        compiler_params=pltpu.CompilerParams(
            dimension_semantics=("parallel",),  # no cross-step accumulation anymore
        ),
    )(x_t, e_t, e, e2_half)

    # Back to NCHW.
    q_nchw = jnp.transpose(q_t[:, :N].reshape(D, B, H, W), (1, 0, 2, 3))

    n_elems = jnp.float32(B * C * H * W)
    loss = jnp.sum(loss_parts) / n_elems
    # dictionary_loss = mean((x.detach() - q)^2), commitment_loss = mean((x - q.detach())^2)
    # — identical forward values; only gradient routing differs in PyTorch.
    dictionary_loss = loss
    commitment_loss = loss

    # Straight-through estimator: value equals q_nchw; stop_gradient mirrors .detach().
    # TODO(synk): gradient routing (custom_vjp for dictionary vs commitment loss and the
    # straight-through estimator) is not implemented; this is a forward-only kernel.
    quantized_x = x_nchw + lax.stop_gradient(q_nchw - x_nchw)

    encoding_indices = idx_tiles.reshape(-1)[:N].reshape(B, H, W)
    return quantized_x, dictionary_loss, commitment_loss, encoding_indices


def _reference_forward(x_nchw, e_i_ts):
    """Pure-JAX reference mirroring the PyTorch forward (use_ema=False)."""
    B, C, H, W = x_nchw.shape
    D, K = e_i_ts.shape
    flat_x = jnp.transpose(x_nchw, (0, 2, 3, 1)).reshape(-1, D)
    distances = (flat_x ** 2).sum(1, keepdims=True) - 2.0 * flat_x @ e_i_ts \
                + (e_i_ts ** 2).sum(0, keepdims=True)
    idx = jnp.argmin(distances, axis=1)
    q = jnp.take(e_i_ts.T, idx, axis=0).reshape(B, H, W, D)
    q_nchw = jnp.transpose(q, (0, 3, 1, 2))
    loss = jnp.mean((x_nchw - q_nchw) ** 2)
    return q_nchw, loss, loss, idx.reshape(B, H, W), distances


if __name__ == "__main__":
    # Module hyperparameters (synthetic, small).
    embedding_dim = 4       # = C
    num_embeddings = 128    # K
    B, H, W = 2, 16, 16

    key = jax.random.PRNGKey(0)
    kx, ke = jax.random.split(key)

    # uniform(-sqrt(3), sqrt(3)), shape (D, K) — matches the PyTorch parameter init.
    limit = 3.0 ** 0.5
    e_i_ts = jax.random.uniform(ke, (embedding_dim, num_embeddings),
                                dtype=jnp.float32, minval=-limit, maxval=limit)
    x = jax.random.normal(kx, (B, embedding_dim, H, W), dtype=jnp.float32)

    q, dict_loss, commit_loss, idx = vector_quantizer_forward(x, e_i_ts)
    jax.block_until_ready((q, dict_loss, commit_loss, idx))

    # Correctness checks against the pure-JAX reference.
    q_r, dl_r, cl_r, idx_r, dists_r = _reference_forward(x, e_i_ts)
    N = B * H * W

    assert q.shape == (B, embedding_dim, H, W) and idx.shape == (B, H, W)

    # 1) Chosen codes must be (near-)optimal under the reference distance matrix
    #    (robust to float near-ties from the reduced distance formulation).
    idx_flat = idx.reshape(-1).astype(jnp.int32)
    chosen_d = dists_r[jnp.arange(N), idx_flat]
    assert bool(jnp.all(chosen_d <= dists_r.min(axis=1) + 1e-4))

    # 2) Quantized output equals the gathered codebook vectors for the chosen codes.
    q_from_idx = jnp.transpose(
        jnp.take(e_i_ts.T, idx_flat, axis=0).reshape(B, H, W, embedding_dim),
        (0, 3, 1, 2))
    assert jnp.allclose(q, q_from_idx, atol=1e-5, rtol=1e-5)

    # 3) Losses match the reference MSE.
    assert jnp.allclose(dict_loss, dl_r, atol=1e-5, rtol=1e-5)
    assert jnp.allclose(commit_loss, cl_r, atol=1e-5, rtol=1e-5)

    # 4) Indices agree with the reference (allowing at most a couple of exact ties).
    assert int(jnp.sum(idx.astype(jnp.int32) == idx_r.astype(jnp.int32))) >= N - 2

    # TODO(synk): EMA codebook update (SonnetExponentialMovingAverage) is a stateful
    # training-time buffer update, not part of the eval forward path; not implemented.
    print("KERNEL_OK")
</pallas_src>

<mosaic_0001>
module attributes {stable_mosaic.version = 11 : i64} {
  func.func @_vq_kernel(%arg0: i32, %arg1: memref<4x512xf32, #tpu.memory_space<vmem>>, %arg2: memref<128x4xf32, #tpu.memory_space<vmem>>, %arg3: memref<4x128xf32, #tpu.memory_space<vmem>>, %arg4: memref<128x1xf32, #tpu.memory_space<vmem>>, %arg5: memref<4x512xf32, #tpu.memory_space<vmem>>, %arg6: memref<1x512xi32, #tpu.memory_space<vmem>>, %arg7: memref<1x1xf32, #tpu.memory_space<vmem>>) attributes {dimension_semantics = [#tpu.dimension_semantics<parallel>], iteration_bounds = array<i64: 1>, scalar_prefetch = 0 : i64, scratch_operands = 0 : i64, tpu.core_type = #tpu.core_type<tc>, window_params = [{transform_indices = @transform_0, window_bounds = array<i64: 4, 512>}, {pipeline_mode = #tpu.pipeline_mode<synchronous>, transform_indices = @transform_1, window_bounds = array<i64: 128, 4>}, {pipeline_mode = #tpu.pipeline_mode<synchronous>, transform_indices = @transform_2, window_bounds = array<i64: 4, 128>}, {pipeline_mode = #tpu.pipeline_mode<synchronous>, transform_indices = @transform_3, window_bounds = array<i64: 128, 1>}, {transform_indices = @transform_4, window_bounds = array<i64: 4, 512>}, {transform_indices = @transform_5, window_bounds = array<i64: 1, 512>}, {transform_indices = @transform_6, window_bounds = array<i64: 1, 1>}]} {
    %c0 = arith.constant 0 : index
    %c0_0 = arith.constant 0 : index
    %0 = vector.load %arg1[%c0, %c0_0] : memref<4x512xf32, #tpu.memory_space<vmem>>, vector<4x512xf32>
    %c0_1 = arith.constant 0 : index
    %c0_2 = arith.constant 0 : index
    %1 = vector.load %arg2[%c0_1, %c0_2] : memref<128x4xf32, #tpu.memory_space<vmem>>, vector<128x4xf32>
    %c0_3 = arith.constant 0 : index
    %c0_4 = arith.constant 0 : index
    %2 = vector.load %arg3[%c0_3, %c0_4] : memref<4x128xf32, #tpu.memory_space<vmem>>, vector<4x128xf32>
    %c0_5 = arith.constant 0 : index
    %c0_6 = arith.constant 0 : index
    %3 = vector.load %arg4[%c0_5, %c0_6] : memref<128x1xf32, #tpu.memory_space<vmem>>, vector<128x1xf32>
    %cst = arith.constant dense<0.000000e+00> : vector<128x512xf32>
    %4 = tpu.matmul %1, %0, %cst {dimension_numbers = #tpu.dot_dimension_numbers<[1], [0], [0], [1], [0, 0, 1, 1], [], []>} : vector<128x4xf32>, vector<4x512xf32>, vector<128x512xf32> -> vector<128x512xf32>
    %5 = vector.broadcast %3 : vector<128x1xf32> to vector<128x512xf32>
    %6 = arith.subf %5, %4 : vector<128x512xf32>
    %cst_7 = arith.constant dense<0x7F800000> : vector<512xf32>
    %7 = vector.multi_reduction <minimumf>, %6, %cst_7 [0] : vector<128x512xf32> to vector<512xf32>
    %8 = vector.shape_cast %7 : vector<512xf32> to vector<1x512xf32>
    %9 = tpu.iota {dimensions = array<i32: 0>} : vector<128x512xi32>
    %10 = vector.broadcast %8 : vector<1x512xf32> to vector<128x512xf32>
    %11 = arith.cmpf oeq, %6, %10 : vector<128x512xf32>
    %c128_i32 = arith.constant 128 : i32
    %12 = vector.broadcast %c128_i32 : i32 to vector<128x512xi32>
    %13 = arith.select %11, %9, %12 : vector<128x512xi1>, vector<128x512xi32>
    %cst_8 = arith.constant dense<2147483647> : vector<512xi32>
    %14 = vector.multi_reduction <minsi>, %13, %cst_8 [0] : vector<128x512xi32> to vector<512xi32>
    %15 = vector.shape_cast %14 : vector<512xi32> to vector<1x512xi32>
    %c0_9 = arith.constant 0 : index
    %c0_10 = arith.constant 0 : index
    %16 = vector.load %arg6[%c0_9, %c0_10] : memref<1x512xi32, #tpu.memory_space<vmem>>, vector<1x512xi32>
    tpu.vector_store %arg6[%c0_9, %c0_10], %15 {strides = array<i32>} : memref<1x512xi32, #tpu.memory_space<vmem>>, vector<1x512xi32>,
    %17 = vector.broadcast %15 : vector<1x512xi32> to vector<128x512xi32>
    %18 = arith.cmpi eq, %9, %17 : vector<128x512xi32>
    %19 = arith.extui %18 : vector<128x512xi1> to vector<128x512xi32>
    %20 = arith.sitofp %19 : vector<128x512xi32> to vector<128x512xf32>
    %cst_11 = arith.constant dense<0.000000e+00> : vector<4x512xf32>
    %21 = tpu.matmul %2, %20, %cst_11 {dimension_numbers = #tpu.dot_dimension_numbers<[1], [0], [0], [1], [0, 0, 1, 1], [], []>} : vector<4x128xf32>, vector<128x512xf32>, vector<4x512xf32> -> vector<4x512xf32>
    %c0_12 = arith.constant 0 : index
    %c0_13 = arith.constant 0 : index
    %22 = vector.load %arg5[%c0_12, %c0_13] : memref<4x512xf32, #tpu.memory_space<vmem>>, vector<4x512xf32>
    tpu.vector_store %arg5[%c0_12, %c0_13], %21 {strides = array<i32>} : memref<4x512xf32, #tpu.memory_space<vmem>>, vector<4x512xf32>,
    %23 = arith.subf %0, %21 : vector<4x512xf32>
    %24 = arith.mulf %23, %23 : vector<4x512xf32>
    %25 = vector.shape_cast %24 : vector<4x512xf32> to vector<1x4x512xf32>
    %cst_14 = arith.constant dense<0.000000e+00> : vector<1xf32>
    %26 = vector.multi_reduction <add>, %25, %cst_14 [1, 2] : vector<1x4x512xf32> to vector<1xf32>
    %27 = vector.shape_cast %26 : vector<1xf32> to vector<1x1x1xf32>
    %28 = vector.extract %27[0, 0, 0] : f32 from vector<1x1x1xf32>
    %29 = vector.broadcast %28 : f32 to vector<1x1xf32>
    %c0_15 = arith.constant 0 : index
    %c0_16 = arith.constant 0 : index
    %30 = vector.load %arg7[%c0_15, %c0_16] : memref<1x1xf32, #tpu.memory_space<vmem>>, vector<1x1xf32>
    tpu.vector_store %arg7[%c0_15, %c0_16], %29 {strides = array<i32>} : memref<1x1xf32, #tpu.memory_space<vmem>>, vector<1x1xf32>,
    return
  }
  func.func @transform_0(%arg0: i32) -> (i32, i32) {
    %c0_i32 = arith.constant 0 : i32
    %c0_i32_0 = arith.constant 0 : i32
    return %c0_i32, %arg0 : i32, i32
  }
  func.func @transform_1(%arg0: i32) -> (i32, i32) {
    %c0_i32 = arith.constant 0 : i32
    %c0_i32_0 = arith.constant 0 : i32
    %c0_i32_1 = arith.constant 0 : i32
    return %c0_i32, %c0_i32_0 : i32, i32
  }
  func.func @transform_2(%arg0: i32) -> (i32, i32) {
    %c0_i32 = arith.constant 0 : i32
    %c0_i32_0 = arith.constant 0 : i32
    %c0_i32_1 = arith.constant 0 : i32
    return %c0_i32, %c0_i32_0 : i32, i32
  }
  func.func @transform_3(%arg0: i32) -> (i32, i32) {
    %c0_i32 = arith.constant 0 : i32
    %c0_i32_0 = arith.constant 0 : i32
    %c0_i32_1 = arith.constant 0 : i32
    return %c0_i32, %c0_i32_0 : i32, i32
  }
  func.func @transform_4(%arg0: i32) -> (i32, i32) {
    %c0_i32 = arith.constant 0 : i32
    %c0_i32_0 = arith.constant 0 : i32
    return %c0_i32, %arg0 : i32, i32
  }
  func.func @transform_5(%arg0: i32) -> (i32, i32) {
    %c0_i32 = arith.constant 0 : i32
    %c0_i32_0 = arith.constant 0 : i32
    return %arg0, %c0_i32 : i32, i32
  }
  func.func @transform_6(%arg0: i32) -> (i32, i32) {
    %c0_i32 = arith.constant 0 : i32
    %c0_i32_0 = arith.constant 0 : i32
    return %arg0, %c0_i32 : i32, i32
  }
}

</mosaic_0001>

<llo_original>
// kernel: vector_quantizer_forward.1
$region0: #{vector_quantizer_forward.1}
  #allocation0 [shape = 'u32[]', space=smem, size = 0x4, offset = 0x4, fixed_abs, tag = 'smem constant byte address 0x4 - core index']
  #allocation1 [shape = 'u32[144,128]{1,0:T(1,128)}', space=vmem, size = 0x12000, scoped, tag = 'internal scratch']
  %s0 = inlined_call_operand.vmem [shape: f32[4,512], index: 0, kind: input, shape index: {}]
  %s1 = inlined_call_operand.vmem [shape: f32[128,4], index: 1, kind: input, shape index: {}]
  %s2 = inlined_call_operand.vmem [shape: f32[4,128], index: 2, kind: input, shape index: {}]
  %s3 = inlined_call_operand.vmem [shape: f32[128,1], index: 3, kind: input, shape index: {}]
  %s4 = inlined_call_operand.vmem [shape: f32[4,512], index: 4, kind: output, shape index: {0}]
  %s5 = inlined_call_operand.vmem [shape: s32[1,512], index: 5, kind: output, shape index: {1}]
  %s6 = inlined_call_operand.hbm [shape: f32[1,1], index: 6, kind: output, shape index: {2}]
  %7 = xla_tuple %s4, %s5, %s6
  %s8 = sld [smem:[#allocation0]]
  $region42: #{vector_quantizer_forward.1} parent=0
    _
  %s10 = ssub.s32 1, %s8
  %s11 = scalar_select 0, %s10, %s8
  $region1: #{vector_quantizer_forward.1} parent=0
    #allocation2 [shape = 'u8[512]{0}', space=vmem, size = 0x400, scoped, tag = 'output window, operand 2, single buffered']
    #allocation3 [shape = 's32[1]{0}', space=sflag, size = 0x4, scoped, tag = 'scoped memory for vector_quantizer_forward.1']
    %12 = vsyncpa [#allocation3], 0
    // Predicated region
    $region2: #{vector_quantizer_forward.1} parent=1 // pred_check
      _
    $region3: #{vector_quantizer_forward.1} parent=1 // pred_check_branch
      %14 = sbr.rel (0) target = $region5
    $region4: #{vector_quantizer_forward.1} parent=1 // pred_region
      _
    $region5: #{vector_quantizer_forward.1} parent=1 // pred_fallthru
      _
    // Predicated region
    $region6: #{vector_quantizer_forward.1} parent=1 // pred_check
      _
    $region7: #{vector_quantizer_forward.1} parent=1 // pred_check_branch
      %16 = sbr.rel (0) target = $region9
    $region8: #{vector_quantizer_forward.1} parent=1 // pred_region
      _
    $region9: #{vector_quantizer_forward.1} parent=1 // pred_fallthru
      _
    // Predicated region
    $region10: #{vector_quantizer_forward.1} parent=1 // pred_check
      _
    $region11: #{vector_quantizer_forward.1} parent=1 // pred_check_branch
      %18 = sbr.rel (0) target = $region13
    $region12: #{vector_quantizer_forward.1} parent=1 // pred_region
      _
    $region13: #{vector_quantizer_forward.1} parent=1 // pred_fallthru
      _
    // Predicated region
    $region14: #{vector_quantizer_forward.1} parent=1 // pred_check
      _
    $region15: #{vector_quantizer_forward.1} parent=1 // pred_check_branch
      %20 = sbr.rel (0) target = $region17
    $region16: #{vector_quantizer_forward.1} parent=1 // pred_region
      _
    $region17: #{vector_quantizer_forward.1} parent=1 // pred_fallthru
      _
    %v21 = vld [vmem:[%s0] sm:$0xff]
    %v22 = vld [vmem:[%s0 + $0x8] sm:$0xff]
    %v23 = vld [vmem:[%s1] sm:$0xff]
    %v24 = vld [vmem:[%s1 + $0x8] sm:$0xff]
    %v25 = vld [vmem:[%s1 + $0x10] sm:$0xff]
    %v26 = vld [vmem:[%s1 + $0x18] sm:$0xff]
    %v27 = vld [vmem:[%s1 + $0x20] sm:$0xff]
    %v28 = vld [vmem:[%s1 + $0x28] sm:$0xff]
    %v29 = vld [vmem:[%s1 + $0x30] sm:$0xff]
    %v30 = vld [vmem:[%s1 + $0x38] sm:$0xff]
    %v31 = vld [vmem:[%s1 + $0x40] sm:$0xff]
    %v32 = vld [vmem:[%s1 + $0x48] sm:$0xff]
    %v33 = vld [vmem:[%s1 + $0x50] sm:$0xff]
    %v34 = vld [vmem:[%s1 + $0x58] sm:$0xff]
    %v35 = vld [vmem:[%s1 + $0x60] sm:$0xff]
    %v36 = vld [vmem:[%s1 + $0x68] sm:$0xff]
    %v37 = vld [vmem:[%s1 + $0x70] sm:$0xff]
    %v38 = vld [vmem:[%s1 + $0x78] sm:$0xff]
    %v39 = vld [vmem:[%s2] sm:$0xf]
    %v40 = vld [vmem:[%s3] sm:$0xff]
    %v41 = vld [vmem:[%s3 + $0x8] sm:$0xff]
    %v42 = vld [vmem:[%s3 + $0x10] sm:$0xff]
    %v43 = vld [vmem:[%s3 + $0x18] sm:$0xff]
    %v44 = vld [vmem:[%s3 + $0x20] sm:$0xff]
    %v45 = vld [vmem:[%s3 + $0x28] sm:$0xff]
    %v46 = vld [vmem:[%s3 + $0x30] sm:$0xff]
    %v47 = vld [vmem:[%s3 + $0x38] sm:$0xff]
    %v48 = vld [vmem:[%s3 + $0x40] sm:$0xff]
    %v49 = vld [vmem:[%s3 + $0x48] sm:$0xff]
    %v50 = vld [vmem:[%s3 + $0x50] sm:$0xff]
    %v51 = vld [vmem:[%s3 + $0x58] sm:$0xff]
    %v52 = vld [vmem:[%s3 + $0x60] sm:$0xff]
    %v53 = vld [vmem:[%s3 + $0x68] sm:$0xff]
    %v54 = vld [vmem:[%s3 + $0x70] sm:$0xff]
    %v55 = vld [vmem:[%s3 + $0x78] sm:$0xff]
    %v58 = vcombine.high %v21, %v21
    %v59 = vcombine.high %v22, %v22
    %vm60 = vcmask 31744
    %v62 = vsel %vm60, %v23, 0
    %v65 = vsel %vm60, %v24, 0
    %v68 = vsel %vm60, %v25, 0
    %v71 = vsel %vm60, %v26, 0
    %v74 = vsel %vm60, %v27, 0
    %v77 = vsel %vm60, %v28, 0
    %v80 = vsel %vm60, %v29, 0
    %v83 = vsel %vm60, %v30, 0
    %v86 = vsel %vm60, %v31, 0
    %v89 = vsel %vm60, %v32, 0
    %v92 = vsel %vm60, %v33, 0
    %v95 = vsel %vm60, %v34, 0
    %v98 = vsel %vm60, %v35, 0
    %v101 = vsel %vm60, %v36, 0
    %v104 = vsel %vm60, %v37, 0
    %v107 = vsel %vm60, %v38, 0
    %vm109 = vcmask 1043456
    %v110 = vsel %vm109, %v21, 0
    %v112 = vsel %vm109, %v58, 0
    %v114 = vsel %vm109, %v22, 0
    %v116 = vsel %vm109, %v59, 0
    %118 = vmatprep.subr.mxu0 0.0
    %119 = vmatpush1.msra.mxu0 0.0
    %120 = vmatprep.subr.mxu0 0.0
    %121 = vmatpush1.msra.mxu0 0.0
    %122 = vmatprep.subr.mxu0 0.0
    %123 = vmatpush1.msra.mxu0 0.0
    %124 = vmatprep.subr.mxu0 0.0
    %125 = vmatpush1.msra.mxu0 0.0
    %126 = vmatprep.subr.mxu0 0.0
    %127 = vmatpush1.msra.mxu0 0.0
    %128 = vmatprep.subr.mxu0 0.0
    %129 = vmatpush1.msra.mxu0 0.0
    %130 = vmatprep.subr.mxu0 0.0
    %131 = vmatpush1.msra.mxu0 0.0
    %132 = vmatprep.subr.mxu0 0.0
    %133 = vmatpush1.msra.mxu0 0.0
    %134 = vmatprep.subr.mxu0 0.0
    %135 = vmatpush1.msra.mxu0 0.0
    %136 = vmatprep.subr.mxu0 0.0
    %137 = vmatpush1.msra.mxu0 0.0
    %138 = vmatprep.subr.mxu0 0.0
    %139 = vmatpush1.msra.mxu0 0.0
    %140 = vmatprep.subr.mxu0 0.0
    %141 = vmatpush1.msra.mxu0 0.0
    %142 = vmatprep.subr.mxu0 0.0
    %143 = vmatpush1.msra.mxu0 0.0
    %144 = vmatprep.subr.mxu0 0.0
    %145 = vmatpush1.msra.mxu0 0.0
    %146 = vmatprep.subr.mxu0 0.0
    %147 = vmatpush1.msra.mxu0 0.0
    %148 = vmatprep.subr.mxu0 %v112
    %149 = vmatpush1.msra.mxu0 %v110
    %150 = vmatprep.subr.mxu0 0.0
    %151 = vmatpush2.msra.mxu0 0.0
    %152 = vmatprep.subr.mxu0 0.0
    %153 = vmatpush2.msra.mxu0 0.0
    %154 = vmatprep.subr.mxu0 0.0
    %155 = vmatpush2.msra.mxu0 0.0
    %156 = vmatprep.subr.mxu0 0.0
    %157 = vmatpush2.msra.mxu0 0.0
    %158 = vmatprep.subr.mxu0 0.0
    %159 = vmatpush2.msra.mxu0 0.0
    %160 = vmatprep.subr.mxu0 0.0
    %161 = vmatpush2.msra.mxu0 0.0
    %162 = vmatprep.subr.mxu0 0.0
    %163 = vmatpush2.msra.mxu0 0.0
    %164 = vmatprep.subr.mxu0 0.0
    %165 = vmatpush2.msra.mxu0 0.0
    %166 = vmatprep.subr.mxu0 0.0
    %167 = vmatpush2.msra.mxu0 0.0
    %168 = vmatprep.subr.mxu0 0.0
    %169 = vmatpush2.msra.mxu0 0.0
    %170 = vmatprep.subr.mxu0 0.0
    %171 = vmatpush2.msra.mxu0 0.0
    %172 = vmatprep.subr.mxu0 0.0
    %173 = vmatpush2.msra.mxu0 0.0
    %174 = vmatprep.subr.mxu0 0.0
    %175 = vmatpush2.msra.mxu0 0.0
    %176 = vmatprep.subr.mxu0 0.0
    %177 = vmatpush2.msra.mxu0 0.0
    %178 = vmatprep.subr.mxu0 0.0
    %179 = vmatpush2.msra.mxu0 0.0
    %180 = vmatprep.subr.mxu0 0.0
    %181 = vmatpush2.msra.mxu0 0.0
    %182 = vmatprep.mubr.f32.mxu0 0.0
    %183 = vmatmul.mubr.f32.gmra.mxu0 %v62
    %v184 = vpop.f32.mrf.mxu0
    %v185 = vadd.f32 0.0, %v184
    %v186 = vpop.f32.mrf.mxu0
    %v187 = vadd.f32 0.0, %v186
    %188 = vmatprep.mubr.f32.mxu0 0.0
    %189 = vmatmul.mubr.f32.gmra.mxu0 %v65
    %v190 = vpop.f32.mrf.mxu0
    %v191 = vadd.f32 0.0, %v190
    %v192 = vpop.f32.mrf.mxu0
    %v193 = vadd.f32 0.0, %v192
    %194 = vmatprep.mubr.f32.mxu0 0.0
    %195 = vmatmul.mubr.f32.gmra.mxu0 %v68
    %v196 = vpop.f32.mrf.mxu0
    %v197 = vadd.f32 0.0, %v196
    %v198 = vpop.f32.mrf.mxu0
    %v199 = vadd.f32 0.0, %v198
    %200 = vmatprep.mubr.f32.mxu0 0.0
    %201 = vmatmul.mubr.f32.gmra.mxu0 %v71
    %v202 = vpop.f32.mrf.mxu0
    %v203 = vadd.f32 0.0, %v202
    %v204 = vpop.f32.mrf.mxu0
    %v205 = vadd.f32 0.0, %v204
    %206 = vmatprep.mubr.f32.mxu0 0.0
    %207 = vmatmul.mubr.f32.gmra.mxu0 %v74
    %v208 = vpop.f32.mrf.mxu0
    %v209 = vadd.f32 0.0, %v208
    %v210 = vpop.f32.mrf.mxu0
    %v211 = vadd.f32 0.0, %v210
    %212 = vmatprep.mubr.f32.mxu0 0.0
    %213 = vmatmul.mubr.f32.gmra.mxu0 %v77
    %v214 = vpop.f32.mrf.mxu0
    %v215 = vadd.f32 0.0, %v214
    %v216 = vpop.f32.mrf.mxu0
    %v217 = vadd.f32 0.0, %v216
    %218 = vmatprep.mubr.f32.mxu0 0.0
    %219 = vmatmul.mubr.f32.gmra.mxu0 %v80
    %v220 = vpop.f32.mrf.mxu0
    %v221 = vadd.f32 0.0, %v220
    %v222 = vpop.f32.mrf.mxu0
    %v223 = vadd.f32 0.0, %v222
    %224 = vmatprep.mubr.f32.mxu0 0.0
    %225 = vmatmul.mubr.f32.gmra.mxu0 %v83
    %v226 = vpop.f32.mrf.mxu0
    %v227 = vadd.f32 0.0, %v226
    %v228 = vpop.f32.mrf.mxu0
    %v229 = vadd.f32 0.0, %v228
    %230 = vmatprep.mubr.f32.mxu0 0.0
    %231 = vmatmul.mubr.f32.gmra.mxu0 %v86
    %v232 = vpop.f32.mrf.mxu0
    %v233 = vadd.f32 0.0, %v232
    %v234 = vpop.f32.mrf.mxu0
    %v235 = vadd.f32 0.0, %v234
    %236 = vmatprep.mubr.f32.mxu0 0.0
    %237 = vmatmul.mubr.f32.gmra.mxu0 %v89
    %v238 = vpop.f32.mrf.mxu0
    %v239 = vadd.f32 0.0, %v238
    %v240 = vpop.f32.mrf.mxu0
    %v241 = vadd.f32 0.0, %v240
    %242 = vmatprep.mubr.f32.mxu0 0.0
    %243 = vmatmul.mubr.f32.gmra.mxu0 %v92
    %v244 = vpop.f32.mrf.mxu0
    %v245 = vadd.f32 0.0, %v244
    %v246 = vpop.f32.mrf.mxu0
    %v247 = vadd.f32 0.0, %v246
    %248 = vmatprep.mubr.f32.mxu0 0.0
    %249 = vmatmul.mubr.f32.gmra.mxu0 %v95
    %v250 = vpop.f32.mrf.mxu0
    %v251 = vadd.f32 0.0, %v250
    %v252 = vpop.f32.mrf.mxu0
    %v253 = vadd.f32 0.0, %v252
    %254 = vmatprep.mubr.f32.mxu0 0.0
    %255 = vmatmul.mubr.f32.gmra.mxu0 %v98
    %v256 = vpop.f32.mrf.mxu0
    %v257 = vadd.f32 0.0, %v256
    %v258 = vpop.f32.mrf.mxu0
    %v259 = vadd.f32 0.0, %v258
    %260 = vmatprep.mubr.f32.mxu0 0.0
    %261 = vmatmul.mubr.f32.gmra.mxu0 %v101
    %v262 = vpop.f32.mrf.mxu0
    %v263 = vadd.f32 0.0, %v262
    %v264 = vpop.f32.mrf.mxu0
    %v265 = vadd.f32 0.0, %v264
    %266 = vmatprep.mubr.f32.mxu0 0.0
    %267 = vmatmul.mubr.f32.gmra.mxu0 %v104
    %v268 = vpop.f32.mrf.mxu0
    %v269 = vadd.f32 0.0, %v268
    %v270 = vpop.f32.mrf.mxu0
    %v271 = vadd.f32 0.0, %v270
    %272 = vmatprep.mubr.f32.mxu0 0.0
    %273 = vmatmul.mubr.f32.gmra.mxu0 %v107
    %v274 = vpop.f32.mrf.mxu0
    %v275 = vadd.f32 0.0, %v274
    %v276 = vpop.f32.mrf.mxu0
    %v277 = vadd.f32 0.0, %v276
    %278 = vdwg.mxu0
    %279 = vmatprep.subr.mxu0 0.0
    %280 = vmatpush1.msra.mxu0 0.0
    %281 = vmatprep.subr.mxu0 0.0
    %282 = vmatpush1.msra.mxu0 0.0
    %283 = vmatprep.subr.mxu0 0.0
    %284 = vmatpush1.msra.mxu0 0.0
    %285 = vmatprep.subr.mxu0 0.0
    %286 = vmatpush1.msra.mxu0 0.0
    %287 = vmatprep.subr.mxu0 0.0
    %288 = vmatpush1.msra.mxu0 0.0
    %289 = vmatprep.subr.mxu0 0.0
    %290 = vmatpush1.msra.mxu0 0.0
    %291 = vmatprep.subr.mxu0 0.0
    %292 = vmatpush1.msra.mxu0 0.0
    %293 = vmatprep.subr.mxu0 0.0
    %294 = vmatpush1.msra.mxu0 0.0
    %295 = vmatprep.subr.mxu0 0.0
    %296 = vmatpush1.msra.mxu0 0.0
    %297 = vmatprep.subr.mxu0 0.0
    %298 = vmatpush1.msra.mxu0 0.0
    %299 = vmatprep.subr.mxu0 0.0
    %300 = vmatpush1.msra.mxu0 0.0
    %301 = vmatprep.subr.mxu0 0.0
    %302 = vmatpush1.msra.mxu0 0.0
    %303 = vmatprep.subr.mxu0 0.0
    %304 = vmatpush1.msra.mxu0 0.0
    %305 = vmatprep.subr.mxu0 0.0
    %306 = vmatpush1.msra.mxu0 0.0
    %307 = vmatprep.subr.mxu0 0.0
    %308 = vmatpush1.msra.mxu0 0.0
    %309 = vmatprep.subr.mxu0 %v116
    %310 = vmatpush1.msra.mxu0 %v114
    %311 = vmatprep.subr.mxu0 0.0
    %312 = vmatpush2.msra.mxu0 0.0
    %313 = vmatprep.subr.mxu0 0.0
    %314 = vmatpush2.msra.mxu0 0.0
    %315 = vmatprep.subr.mxu0 0.0
    %316 = vmatpush2.msra.mxu0 0.0
    %317 = vmatprep.subr.mxu0 0.0
    %318 = vmatpush2.msra.mxu0 0.0
    %319 = vmatprep.subr.mxu0 0.0
    %320 = vmatpush2.msra.mxu0 0.0
    %321 = vmatprep.subr.mxu0 0.0
    %322 = vmatpush2.msra.mxu0 0.0
    %323 = vmatprep.subr.mxu0 0.0
    %324 = vmatpush2.msra.mxu0 0.0
    %325 = vmatprep.subr.mxu0 0.0
    %326 = vmatpush2.msra.mxu0 0.0
    %327 = vmatprep.subr.mxu0 0.0
    %328 = vmatpush2.msra.mxu0 0.0
    %329 = vmatprep.subr.mxu0 0.0
    %330 = vmatpush2.msra.mxu0 0.0
    %331 = vmatprep.subr.mxu0 0.0
    %332 = vmatpush2.msra.mxu0 0.0
    %333 = vmatprep.subr.mxu0 0.0
    %334 = vmatpush2.msra.mxu0 0.0
    %335 = vmatprep.subr.mxu0 0.0
    %336 = vmatpush2.msra.mxu0 0.0
    %337 = vmatprep.subr.mxu0 0.0
    %338 = vmatpush2.msra.mxu0 0.0
    %339 = vmatprep.subr.mxu0 0.0
    %340 = vmatpush2.msra.mxu0 0.0
    %341 = vmatprep.subr.mxu0 0.0
    %342 = vmatpush2.msra.mxu0 0.0
    %343 = vmatprep.mubr.f32.mxu0 0.0
    %344 = vmatmul.mubr.f32.gmra.mxu0 %v62
    %v345 = vpop.f32.mrf.mxu0
    %v346 = vadd.f32 0.0, %v345
    %v347 = vpop.f32.mrf.mxu0
    %v348 = vadd.f32 0.0, %v347
    %349 = vmatprep.mubr.f32.mxu0 0.0
    %350 = vmatmul.mubr.f32.gmra.mxu0 %v65
    %v351 = vpop.f32.mrf.mxu0
    %v352 = vadd.f32 0.0, %v351
    %v353 = vpop.f32.mrf.mxu0
    %v354 = vadd.f32 0.0, %v353
    %355 = vmatprep.mubr.f32.mxu0 0.0
    %356 = vmatmul.mubr.f32.gmra.mxu0 %v68
    %v357 = vpop.f32.mrf.mxu0
    %v358 = vadd.f32 0.0, %v357
    %v359 = vpop.f32.mrf.mxu0
    %v360 = vadd.f32 0.0, %v359
    %361 = vmatprep.mubr.f32.mxu0 0.0
    %362 = vmatmul.mubr.f32.gmra.mxu0 %v71
    %v363 = vpop.f32.mrf.mxu0
    %v364 = vadd.f32 0.0, %v363
    %v365 = vpop.f32.mrf.mxu0
    %v366 = vadd.f32 0.0, %v365
    %367 = vmatprep.mubr.f32.mxu0 0.0
    %368 = vmatmul.mubr.f32.gmra.mxu0 %v74
    %v369 = vpop.f32.mrf.mxu0
    %v370 = vadd.f32 0.0, %v369
    %v371 = vpop.f32.mrf.mxu0
    %v372 = vadd.f32 0.0, %v371
    %373 = vmatprep.mubr.f32.mxu0 0.0
    %374 = vmatmul.mubr.f32.gmra.mxu0 %v77
    %v375 = vpop.f32.mrf.mxu0
    %v376 = vadd.f32 0.0, %v375
    %v377 = vpop.f32.mrf.mxu0
    %v378 = vadd.f32 0.0, %v377
    %379 = vmatprep.mubr.f32.mxu0 0.0
    %380 = vmatmul.mubr.f32.gmra.mxu0 %v80
    %v381 = vpop.f32.mrf.mxu0
    %v382 = vadd.f32 0.0, %v381
    %v383 = vpop.f32.mrf.mxu0
    %v384 = vadd.f32 0.0, %v383
    %385 = vmatprep.mubr.f32.mxu0 0.0
    %386 = vmatmul.mubr.f32.gmra.mxu0 %v83
    %v387 = vpop.f32.mrf.mxu0
    %v388 = vadd.f32 0.0, %v387
    %v389 = vpop.f32.mrf.mxu0
    %v390 = vadd.f32 0.0, %v389
    %391 = vmatprep.mubr.f32.mxu0 0.0
    %392 = vmatmul.mubr.f32.gmra.mxu0 %v86
    %v393 = vpop.f32.mrf.mxu0
    %v394 = vadd.f32 0.0, %v393
    %v395 = vpop.f32.mrf.mxu0
    %v396 = vadd.f32 0.0, %v395
    %397 = vmatprep.mubr.f32.mxu0 0.0
    %398 = vmatmul.mubr.f32.gmra.mxu0 %v89
    %v399 = vpop.f32.mrf.mxu0
    %v400 = vadd.f32 0.0, %v399
    %v401 = vpop.f32.mrf.mxu0
    %v402 = vadd.f32 0.0, %v401
    %403 = vmatprep.mubr.f32.mxu0 0.0
    %404 = vmatmul.mubr.f32.gmra.mxu0 %v92
    %v405 = vpop.f32.mrf.mxu0
    %v406 = vadd.f32 0.0, %v405
    %v407 = vpop.f32.mrf.mxu0
    %v408 = vadd.f32 0.0, %v407
    %409 = vmatprep.mubr.f32.mxu0 0.0
    %410 = vmatmul.mubr.f32.gmra.mxu0 %v95
    %v411 = vpop.f32.mrf.mxu0
    %v412 = vadd.f32 0.0, %v411
    %v413 = vpop.f32.mrf.mxu0
    %v414 = vadd.f32 0.0, %v413
    %415 = vmatprep.mubr.f32.mxu0 0.0
    %416 = vmatmul.mubr.f32.gmra.mxu0 %v98
    %v417 = vpop.f32.mrf.mxu0
    %v418 = vadd.f32 0.0, %v417
    %v419 = vpop.f32.mrf.mxu0
    %v420 = vadd.f32 0.0, %v419
    %421 = vmatprep.mubr.f32.mxu0 0.0
    %422 = vmatmul.mubr.f32.gmra.mxu0 %v101
    %v423 = vpop.f32.mrf.mxu0
    %v424 = vadd.f32 0.0, %v423
    %v425 = vpop.f32.mrf.mxu0
    %v426 = vadd.f32 0.0, %v425
    %427 = vmatprep.mubr.f32.mxu0 0.0
    %428 = vmatmul.mubr.f32.gmra.mxu0 %v104
    %v429 = vpop.f32.mrf.mxu0
    %v430 = vadd.f32 0.0, %v429
    %v431 = vpop.f32.mrf.mxu0
    %v432 = vadd.f32 0.0, %v431
    %433 = vmatprep.mubr.f32.mxu0 0.0
    %434 = vmatmul.mubr.f32.gmra.mxu0 %v107
    %v435 = vpop.f32.mrf.mxu0
    %v436 = vadd.f32 0.0, %v435
    %v437 = vpop.f32.mrf.mxu0
    %v438 = vadd.f32 0.0, %v437
    %439 = vdwg.mxu0
    %441 = vset.pattern.permute.xlu0 0
    %442 = vperm.xlu0 %441, %v40
    %v443 = vpop.permute.xlu0 %442
    %446 = vset.pattern.permute.xlu0 0
    %447 = vperm.xlu0 %446, %v41
    %v448 = vpop.permute.xlu0 %447
    %451 = vset.pattern.permute.xlu0 0
    %452 = vperm.xlu0 %451, %v42
    %v453 = vpop.permute.xlu0 %452
    %456 = vset.pattern.permute.xlu0 0
    %457 = vperm.xlu0 %456, %v43
    %v458 = vpop.permute.xlu0 %457
    %461 = vset.pattern.permute.xlu0 0
    %462 = vperm.xlu0 %461, %v44
    %v463 = vpop.permute.xlu0 %462
    %466 = vset.pattern.permute.xlu0 0
    %467 = vperm.xlu0 %466, %v45
    %v468 = vpop.permute.xlu0 %467
    %471 = vset.pattern.permute.xlu0 0
    %472 = vperm.xlu0 %471, %v46
    %v473 = vpop.permute.xlu0 %472
    %476 = vset.pattern.permute.xlu0 0
    %477 = vperm.xlu0 %476, %v47
    %v478 = vpop.permute.xlu0 %477
    %481 = vset.pattern.permute.xlu0 0
    %482 = vperm.xlu0 %481, %v48
    %v483 = vpop.permute.xlu0 %482
    %486 = vset.pattern.permute.xlu0 0
    %487 = vperm.xlu0 %486, %v49
    %v488 = vpop.permute.xlu0 %487
    %491 = vset.pattern.permute.xlu0 0
    %492 = vperm.xlu0 %491, %v50
    %v493 = vpop.permute.xlu0 %492
    %496 = vset.pattern.permute.xlu0 0
    %497 = vperm.xlu0 %496, %v51
    %v498 = vpop.permute.xlu0 %497
    %501 = vset.pattern.permute.xlu0 0
    %502 = vperm.xlu0 %501, %v52
    %v503 = vpop.permute.xlu0 %502
    %506 = vset.pattern.permute.xlu0 0
    %507 = vperm.xlu0 %506, %v53
    %v508 = vpop.permute.xlu0 %507
    %511 = vset.pattern.permute.xlu0 0
    %512 = vperm.xlu0 %511, %v54
    %v513 = vpop.permute.xlu0 %512
    %516 = vset.pattern.permute.xlu0 0
    %517 = vperm.xlu0 %516, %v55
    %v518 = vpop.permute.xlu0 %517
    %v520 = vsub.f32 %v443, %v185
    %v521 = vsub.f32 %v443, %v187
    %v522 = vsub.f32 %v443, %v346
    %v523 = vsub.f32 %v443, %v348
    %v524 = vsub.f32 %v448, %v191
    %v525 = vsub.f32 %v448, %v193
    %v526 = vsub.f32 %v448, %v352
    %v527 = vsub.f32 %v448, %v354
    %v528 = vsub.f32 %v453, %v197
    %v529 = vsub.f32 %v453, %v199
    %v530 = vsub.f32 %v453, %v358
    %v531 = vsub.f32 %v453, %v360
    %v532 = vsub.f32 %v458, %v203
    %v533 = vsub.f32 %v458, %v205
    %v534 = vsub.f32 %v458, %v364
    %v535 = vsub.f32 %v458, %v366
    %v536 = vsub.f32 %v463, %v209
    %v537 = vsub.f32 %v463, %v211
    %v538 = vsub.f32 %v463, %v370
    %v539 = vsub.f32 %v463, %v372
    %v540 = vsub.f32 %v468, %v215
    %v541 = vsub.f32 %v468, %v217
    %v542 = vsub.f32 %v468, %v376
    %v543 = vsub.f32 %v468, %v378
    %v544 = vsub.f32 %v473, %v221
    %v545 = vsub.f32 %v473, %v223
    %v546 = vsub.f32 %v473, %v382
    %v547 = vsub.f32 %v473, %v384
    %v548 = vsub.f32 %v478, %v227
    %v549 = vsub.f32 %v478, %v229
    %v550 = vsub.f32 %v478, %v388
    %v551 = vsub.f32 %v478, %v390
    %v552 = vsub.f32 %v483, %v233
    %v553 = vsub.f32 %v483, %v235
    %v554 = vsub.f32 %v483, %v394
    %v555 = vsub.f32 %v483, %v396
    %v556 = vsub.f32 %v488, %v239
    %v557 = vsub.f32 %v488, %v241
    %v558 = vsub.f32 %v488, %v400
    %v559 = vsub.f32 %v488, %v402
    %v560 = vsub.f32 %v493, %v245
    %v561 = vsub.f32 %v493, %v247
    %v562 = vsub.f32 %v493, %v406
    %v563 = vsub.f32 %v493, %v408
    %v564 = vsub.f32 %v498, %v251
    %v565 = vsub.f32 %v498, %v253
    %v566 = vsub.f32 %v498, %v412
    %v567 = vsub.f32 %v498, %v414
    %v568 = vsub.f32 %v503, %v257
    %v569 = vsub.f32 %v503, %v259
    %v570 = vsub.f32 %v503, %v418
    %v571 = vsub.f32 %v503, %v420
    %v572 = vsub.f32 %v508, %v263
    %v573 = vsub.f32 %v508, %v265
    %v574 = vsub.f32 %v508, %v424
    %v575 = vsub.f32 %v508, %v426
    %v576 = vsub.f32 %v513, %v269
    %v577 = vsub.f32 %v513, %v271
    %v578 = vsub.f32 %v513, %v430
    %v579 = vsub.f32 %v513, %v432
    %v580 = vsub.f32 %v518, %v275
    %v581 = vsub.f32 %v518, %v277
    %v582 = vsub.f32 %v518, %v436
    %v583 = vsub.f32 %v518, %v438
    %v584 = vmin.f32 %v520, %v524
    %v585 = vmin.f32 %v584, %v528
    %v586 = vmin.f32 %v585, %v532
    %v587 = vmin.f32 %v586, %v536
    %v588 = vmin.f32 %v587, %v540
    %v589 = vmin.f32 %v588, %v544
    %v590 = vmin.f32 %v589, %v548
    %v591 = vmin.f32 %v590, %v552
    %v592 = vmin.f32 %v591, %v556
    %v593 = vmin.f32 %v592, %v560
    %v594 = vmin.f32 %v593, %v564
    %v595 = vmin.f32 %v594, %v568
    %v596 = vmin.f32 %v595, %v572
    %v597 = vmin.f32 %v596, %v576
    %v598 = vmin.f32 %v597, %v580
    %v599 = vrot.slane %v598, 4
    %v600 = vmin.f32 %v598, %v599
    %v601 = vrot.slane %v600, 2
    %v602 = vmin.f32 %v600, %v601
    %v603 = vrot.slane %v602, 1
    %v604 = vmin.f32 %v602, %v603
    %v605 = vmin.f32 %v521, %v525
    %v606 = vmin.f32 %v605, %v529
    %v607 = vmin.f32 %v606, %v533
    %v608 = vmin.f32 %v607, %v537
    %v609 = vmin.f32 %v608, %v541
    %v610 = vmin.f32 %v609, %v545
    %v611 = vmin.f32 %v610, %v549
    %v612 = vmin.f32 %v611, %v553
    %v613 = vmin.f32 %v612, %v557
    %v614 = vmin.f32 %v613, %v561
    %v615 = vmin.f32 %v614, %v565
    %v616 = vmin.f32 %v615, %v569
    %v617 = vmin.f32 %v616, %v573
    %v618 = vmin.f32 %v617, %v577
    %v619 = vmin.f32 %v618, %v581
    %v620 = vrot.slane %v619, 4
    %v621 = vmin.f32 %v619, %v620
    %v622 = vrot.slane %v621, 2
    %v623 = vmin.f32 %v621, %v622
    %v624 = vrot.slane %v623, 1
    %v625 = vmin.f32 %v623, %v624
    %v626 = vmin.f32 %v522, %v526
    %v627 = vmin.f32 %v626, %v530
    %v628 = vmin.f32 %v627, %v534
    %v629 = vmin.f32 %v628, %v538
    %v630 = vmin.f32 %v629, %v542
    %v631 = vmin.f32 %v630, %v546
    %v632 = vmin.f32 %v631, %v550
    %v633 = vmin.f32 %v632, %v554
    %v634 = vmin.f32 %v633, %v558
    %v635 = vmin.f32 %v634, %v562
    %v636 = vmin.f32 %v635, %v566
    %v637 = vmin.f32 %v636, %v570
    %v638 = vmin.f32 %v637, %v574
    %v639 = vmin.f32 %v638, %v578
    %v640 = vmin.f32 %v639, %v582
    %v641 = vrot.slane %v640, 4
    %v642 = vmin.f32 %v640, %v641
    %v643 = vrot.slane %v642, 2
    %v644 = vmin.f32 %v642, %v643
    %v645 = vrot.slane %v644, 1
    %v646 = vmin.f32 %v644, %v645
    %v647 = vmin.f32 %v523, %v527
    %v648 = vmin.f32 %v647, %v531
    %v649 = vmin.f32 %v648, %v535
    %v650 = vmin.f32 %v649, %v539
    %v651 = vmin.f32 %v650, %v543
    %v652 = vmin.f32 %v651, %v547
    %v653 = vmin.f32 %v652, %v551
    %v654 = vmin.f32 %v653, %v555
    %v655 = vmin.f32 %v654, %v559
    %v656 = vmin.f32 %v655, %v563
    %v657 = vmin.f32 %v656, %v567
    %v658 = vmin.f32 %v657, %v571
    %v659 = vmin.f32 %v658, %v575
    %v660 = vmin.f32 %v659, %v579
    %v661 = vmin.f32 %v660, %v583
    %v662 = vrot.slane %v661, 4
    %v663 = vmin.f32 %v661, %v662
    %v664 = vrot.slane %v663, 2
    %v665 = vmin.f32 %v663, %v664
    %v666 = vrot.slane %v665, 1
    %v667 = vmin.f32 %v665, %v666
    %v668 = vlaneseq
    %v669 = vshrl.u32 %v668, 7
    %v670 = vadd.s32 %v669, 8
    %v671 = vadd.s32 %v669, 16
    %v672 = vadd.s32 %v669, 24
    %v673 = vadd.s32 %v669, 32
    %v674 = vadd.s32 %v669, 40
    %v675 = vadd.s32 %v669, 48
    %v676 = vadd.s32 %v669, 56
    %v677 = vadd.s32 %v669, 64
    %v678 = vadd.s32 %v669, 72
    %v679 = vadd.s32 %v669, 80
    %v680 = vadd.s32 %v669, 88
    %v681 = vadd.s32 %v669, 96
    %v682 = vadd.s32 %v669, 104
    %v683 = vadd.s32 %v669, 112
    %v684 = vadd.s32 %v669, 120
    %vm685 = vcmp.eq.f32.partialorder %v520, %v604
    %vm686 = vcmp.eq.f32.partialorder %v521, %v625
    %vm687 = vcmp.eq.f32.partialorder %v522, %v646
    %vm688 = vcmp.eq.f32.partialorder %v523, %v667
    %vm689 = vcmp.eq.f32.partialorder %v524, %v604
    %vm690 = vcmp.eq.f32.partialorder %v525, %v625
    %vm691 = vcmp.eq.f32.partialorder %v526, %v646
    %vm692 = vcmp.eq.f32.partialorder %v527, %v667
    %vm693 = vcmp.eq.f32.partialorder %v528, %v604
    %vm694 = vcmp.eq.f32.partialorder %v529, %v625
    %vm695 = vcmp.eq.f32.partialorder %v530, %v646
    %vm696 = vcmp.eq.f32.partialorder %v531, %v667
    %vm697 = vcmp.eq.f32.partialorder %v532, %v604
    %vm698 = vcmp.eq.f32.partialorder %v533, %v625
    %vm699 = vcmp.eq.f32.partialorder %v534, %v646
    %vm700 = vcmp.eq.f32.partialorder %v535, %v667
    %vm701 = vcmp.eq.f32.partialorder %v536, %v604
    %vm702 = vcmp.eq.f32.partialorder %v537, %v625
    %vm703 = vcmp.eq.f32.partialorder %v538, %v646
    %vm704 = vcmp.eq.f32.partialorder %v539, %v667
    %vm705 = vcmp.eq.f32.partialorder %v540, %v604
    %vm706 = vcmp.eq.f32.partialorder %v541, %v625
    %vm707 = vcmp.eq.f32.partialorder %v542, %v646
    %vm708 = vcmp.eq.f32.partialorder %v543, %v667
    %vm709 = vcmp.eq.f32.partialorder %v544, %v604
    %vm710 = vcmp.eq.f32.partialorder %v545, %v625
    %vm711 = vcmp.eq.f32.partialorder %v546, %v646
    %vm712 = vcmp.eq.f32.partialorder %v547, %v667
    %vm713 = vcmp.eq.f32.partialorder %v548, %v604
    %vm714 = vcmp.eq.f32.partialorder %v549, %v625
    %vm715 = vcmp.eq.f32.partialorder %v550, %v646
    %vm716 = vcmp.eq.f32.partialorder %v551, %v667
    %vm717 = vcmp.eq.f32.partialorder %v552, %v604
    %vm718 = vcmp.eq.f32.partialorder %v553, %v625
    %vm719 = vcmp.eq.f32.partialorder %v554, %v646
    %vm720 = vcmp.eq.f32.partialorder %v555, %v667
    %vm721 = vcmp.eq.f32.partialorder %v556, %v604
    %vm722 = vcmp.eq.f32.partialorder %v557, %v625
    %vm723 = vcmp.eq.f32.partialorder %v558, %v646
    %vm724 = vcmp.eq.f32.partialorder %v559, %v667
    %vm725 = vcmp.eq.f32.partialorder %v560, %v604
    %vm726 = vcmp.eq.f32.partialorder %v561, %v625
    %vm727 = vcmp.eq.f32.partialorder %v562, %v646
    %vm728 = vcmp.eq.f32.partialorder %v563, %v667
    %vm729 = vcmp.eq.f32.partialorder %v564, %v604
    %vm730 = vcmp.eq.f32.partialorder %v565, %v625
    %vm731 = vcmp.eq.f32.partialorder %v566, %v646
    %vm732 = vcmp.eq.f32.partialorder %v567, %v667
    %vm733 = vcmp.eq.f32.partialorder %v568, %v604
    %vm734 = vcmp.eq.f32.partialorder %v569, %v625
    %vm735 = vcmp.eq.f32.partialorder %v570, %v646
    %vm736 = vcmp.eq.f32.partialorder %v571, %v667
    %vm737 = vcmp.eq.f32.partialorder %v572, %v604
    %vm738 = vcmp.eq.f32.partialorder %v573, %v625
    %vm739 = vcmp.eq.f32.partialorder %v574, %v646
    %vm740 = vcmp.eq.f32.partialorder %v575, %v667
    %vm741 = vcmp.eq.f32.partialorder %v576, %v604
    %vm742 = vcmp.eq.f32.partialorder %v577, %v625
    %vm743 = vcmp.eq.f32.partialorder %v578, %v646
    %vm744 = vcmp.eq.f32.partialorder %v579, %v667
    %vm745 = vcmp.eq.f32.partialorder %v580, %v604
    %vm746 = vcmp.eq.f32.partialorder %v581, %v625
    %vm747 = vcmp.eq.f32.partialorder %v582, %v646
    %vm748 = vcmp.eq.f32.partialorder %v583, %v667
    %v749 = vsel %vm685, %v669, 128
    %v750 = vsel %vm686, %v669, 128
    %v751 = vsel %vm687, %v669, 128
    %v752 = vsel %vm688, %v669, 128
    %v753 = vsel %vm689, %v670, 128
    %v754 = vsel %vm690, %v670, 128
    %v755 = vsel %vm691, %v670, 128
    %v756 = vsel %vm692, %v670, 128
    %v757 = vsel %vm693, %v671, 128
    %v758 = vsel %vm694, %v671, 128
    %v759 = vsel %vm695, %v671, 128
    %v760 = vsel %vm696, %v671, 128
    %v761 = vsel %vm697, %v672, 128
    %v762 = vsel %vm698, %v672, 128
    %v763 = vsel %vm699, %v672, 128
    %v764 = vsel %vm700, %v672, 128
    %v765 = vsel %vm701, %v673, 128
    %v766 = vsel %vm702, %v673, 128
    %v767 = vsel %vm703, %v673, 128
    %v768 = vsel %vm704, %v673, 128
    %v769 = vsel %vm705, %v674, 128
    %v770 = vsel %vm706, %v674, 128
    %v771 = vsel %vm707, %v674, 128
    %v772 = vsel %vm708, %v674, 128
    %v773 = vsel %vm709, %v675, 128
    %v774 = vsel %vm710, %v675, 128
    %v775 = vsel %vm711, %v675, 128
    %v776 = vsel %vm712, %v675, 128
    %v777 = vsel %vm713, %v676, 128
    %v778 = vsel %vm714, %v676, 128
    %v779 = vsel %vm715, %v676, 128
    %v780 = vsel %vm716, %v676, 128
    %v781 = vsel %vm717, %v677, 128
    %v782 = vsel %vm718, %v677, 128
    %v783 = vsel %vm719, %v677, 128
    %v784 = vsel %vm720, %v677, 128
    %v785 = vsel %vm721, %v678, 128
    %v786 = vsel %vm722, %v678, 128
    %v787 = vsel %vm723, %v678, 128
    %v788 = vsel %vm724, %v678, 128
    %v789 = vsel %vm725, %v679, 128
    %v790 = vsel %vm726, %v679, 128
    %v791 = vsel %vm727, %v679, 128
    %v792 = vsel %vm728, %v679, 128
    %v793 = vsel %vm729, %v680, 128
    %v794 = vsel %vm730, %v680, 128
    %v795 = vsel %vm731, %v680, 128
    %v796 = vsel %vm732, %v680, 128
    %v797 = vsel %vm733, %v681, 128
    %v798 = vsel %vm734, %v681, 128
    %v799 = vsel %vm735, %v681, 128
    %v800 = vsel %vm736, %v681, 128
    %v801 = vsel %vm737, %v682, 128
    %v802 = vsel %vm738, %v682, 128
    %v803 = vsel %vm739, %v682, 128
    %v804 = vsel %vm740, %v682, 128
    %v805 = vsel %vm741, %v683, 128
    %v806 = vsel %vm742, %v683, 128
    %v807 = vsel %vm743, %v683, 128
    %v808 = vsel %vm744, %v683, 128
    %v809 = vsel %vm745, %v684, 128
    %v810 = vsel %vm746, %v684, 128
    %v811 = vsel %vm747, %v684, 128
    %v812 = vsel %vm748, %v684, 128
    %vm813 = vcmp.lt.s32.totalorder %v749, %v753
    %v814 = vsel %vm813, %v749, %v753
    %vm815 = vcmp.lt.s32.totalorder %v814, %v757
    %v816 = vsel %vm815, %v814, %v757
    %vm817 = vcmp.lt.s32.totalorder %v816, %v761
    %v818 = vsel %vm817, %v816, %v761
    %vm819 = vcmp.lt.s32.totalorder %v818, %v765
    %v820 = vsel %vm819, %v818, %v765
    %vm821 = vcmp.lt.s32.totalorder %v820, %v769
    %v822 = vsel %vm821, %v820, %v769
    %vm823 = vcmp.lt.s32.totalorder %v822, %v773
    %v824 = vsel %vm823, %v822, %v773
    %vm825 = vcmp.lt.s32.totalorder %v824, %v777
    %v826 = vsel %vm825, %v824, %v777
    %vm827 = vcmp.lt.s32.totalorder %v826, %v781
    %v828 = vsel %vm827, %v826, %v781
    %vm829 = vcmp.lt.s32.totalorder %v828, %v785
    %v830 = vsel %vm829, %v828, %v785
    %vm831 = vcmp.lt.s32.totalorder %v830, %v789
    %v832 = vsel %vm831, %v830, %v789
    %vm833 = vcmp.lt.s32.totalorder %v832, %v793
    %v834 = vsel %vm833, %v832, %v793
    %vm835 = vcmp.lt.s32.totalorder %v834, %v797
    %v836 = vsel %vm835, %v834, %v797
    %vm837 = vcmp.lt.s32.totalorder %v836, %v801
    %v838 = vsel %vm837, %v836, %v801
    %vm839 = vcmp.lt.s32.totalorder %v838, %v805
    %v840 = vsel %vm839, %v838, %v805
    %vm841 = vcmp.lt.s32.totalorder %v840, %v809
    %v842 = vsel %vm841, %v840, %v809
    %v843 = vrot.slane %v842, 4
    %vm844 = vcmp.lt.s32.totalorder %v842, %v843
    %v845 = vsel %vm844, %v842, %v843
    %v846 = vrot.slane %v845, 2
    %vm847 = vcmp.lt.s32.totalorder %v845, %v846
    %v848 = vsel %vm847, %v845, %v846
    %v849 = vrot.slane %v848, 1
    %vm850 = vcmp.lt.s32.totalorder %v848, %v849
    %v851 = vsel %vm850, %v848, %v849
    %vm852 = vcmp.lt.s32.totalorder %v750, %v754
    %v853 = vsel %vm852, %v750, %v754
    %vm854 = vcmp.lt.s32.totalorder %v853, %v758
    %v855 = vsel %vm854, %v853, %v758
    %vm856 = vcmp.lt.s32.totalorder %v855, %v762
    %v857 = vsel %vm856, %v855, %v762
    %vm858 = vcmp.lt.s32.totalorder %v857, %v766
    %v859 = vsel %vm858, %v857, %v766
    %vm860 = vcmp.lt.s32.totalorder %v859, %v770
    %v861 = vsel %vm860, %v859, %v770
    %vm862 = vcmp.lt.s32.totalorder %v861, %v774
    %v863 = vsel %vm862, %v861, %v774
    %vm864 = vcmp.lt.s32.totalorder %v863, %v778
    %v865 = vsel %vm864, %v863, %v778
    %vm866 = vcmp.lt.s32.totalorder %v865, %v782
    %v867 = vsel %vm866, %v865, %v782
    %vm868 = vcmp.lt.s32.totalorder %v867, %v786
    %v869 = vsel %vm868, %v867, %v786
    %vm870 = vcmp.lt.s32.totalorder %v869, %v790
    %v871 = vsel %vm870, %v869, %v790
    %vm872 = vcmp.lt.s32.totalorder %v871, %v794
    %v873 = vsel %vm872, %v871, %v794
    %vm874 = vcmp.lt.s32.totalorder %v873, %v798
    %v875 = vsel %vm874, %v873, %v798
    %vm876 = vcmp.lt.s32.totalorder %v875, %v802
    %v877 = vsel %vm876, %v875, %v802
    %vm878 = vcmp.lt.s32.totalorder %v877, %v806
    %v879 = vsel %vm878, %v877, %v806
    %vm880 = vcmp.lt.s32.totalorder %v879, %v810
    %v881 = vsel %vm880, %v879, %v810
    %v882 = vrot.slane %v881, 4
    %vm883 = vcmp.lt.s32.totalorder %v881, %v882
    %v884 = vsel %vm883, %v881, %v882
    %v885 = vrot.slane %v884, 2
    %vm886 = vcmp.lt.s32.totalorder %v884, %v885
    %v887 = vsel %vm886, %v884, %v885
    %v888 = vrot.slane %v887, 1
    %vm889 = vcmp.lt.s32.totalorder %v887, %v888
    %v890 = vsel %vm889, %v887, %v888
    %vm891 = vcmp.lt.s32.totalorder %v751, %v755
    %v892 = vsel %vm891, %v751, %v755
    %vm893 = vcmp.lt.s32.totalorder %v892, %v759
    %v894 = vsel %vm893, %v892, %v759
    %vm895 = vcmp.lt.s32.totalorder %v894, %v763
    %v896 = vsel %vm895, %v894, %v763
    %vm897 = vcmp.lt.s32.totalorder %v896, %v767
    %v898 = vsel %vm897, %v896, %v767
    %vm899 = vcmp.lt.s32.totalorder %v898, %v771
    %v900 = vsel %vm899, %v898, %v771
    %vm901 = vcmp.lt.s32.totalorder %v900, %v775
    %v902 = vsel %vm901, %v900, %v775
    %vm903 = vcmp.lt.s32.totalorder %v902, %v779
    %v904 = vsel %vm903, %v902, %v779
    %vm905 = vcmp.lt.s32.totalorder %v904, %v783
    %v906 = vsel %vm905, %v904, %v783
    %vm907 = vcmp.lt.s32.totalorder %v906, %v787
    %v908 = vsel %vm907, %v906, %v787
    %vm909 = vcmp.lt.s32.totalorder %v908, %v791
    %v910 = vsel %vm909, %v908, %v791
    %vm911 = vcmp.lt.s32.totalorder %v910, %v795
    %v912 = vsel %vm911, %v910, %v795
    %vm913 = vcmp.lt.s32.totalorder %v912, %v799
    %v914 = vsel %vm913, %v912, %v799
    %vm915 = vcmp.lt.s32.totalorder %v914, %v803
    %v916 = vsel %vm915, %v914, %v803
    %vm917 = vcmp.lt.s32.totalorder %v916, %v807
    %v918 = vsel %vm917, %v916, %v807
    %vm919 = vcmp.lt.s32.totalorder %v918, %v811
    %v920 = vsel %vm919, %v918, %v811
    %v921 = vrot.slane %v920, 4
    %vm922 = vcmp.lt.s32.totalorder %v920, %v921
    %v923 = vsel %vm922, %v920, %v921
    %v924 = vrot.slane %v923, 2
    %vm925 = vcmp.lt.s32.totalorder %v923, %v924
    %v926 = vsel %vm925, %v923, %v924
    %v927 = vrot.slane %v926, 1
    %vm928 = vcmp.lt.s32.totalorder %v926, %v927
    %v929 = vsel %vm928, %v926, %v927
    %vm930 = vcmp.lt.s32.totalorder %v752, %v756
    %v931 = vsel %vm930, %v752, %v756
    %vm932 = vcmp.lt.s32.totalorder %v931, %v760
    %v933 = vsel %vm932, %v931, %v760
    %vm934 = vcmp.lt.s32.totalorder %v933, %v764
    %v935 = vsel %vm934, %v933, %v764
    %vm936 = vcmp.lt.s32.totalorder %v935, %v768
    %v937 = vsel %vm936, %v935, %v768
    %vm938 = vcmp.lt.s32.totalorder %v937, %v772
    %v939 = vsel %vm938, %v937, %v772
    %vm940 = vcmp.lt.s32.totalorder %v939, %v776
    %v941 = vsel %vm940, %v939, %v776
    %vm942 = vcmp.lt.s32.totalorder %v941, %v780
    %v943 = vsel %vm942, %v941, %v780
    %vm944 = vcmp.lt.s32.totalorder %v943, %v784
    %v945 = vsel %vm944, %v943, %v784
    %vm946 = vcmp.lt.s32.totalorder %v945, %v788
    %v947 = vsel %vm946, %v945, %v788
    %vm948 = vcmp.lt.s32.totalorder %v947, %v792
    %v949 = vsel %vm948, %v947, %v792
    %vm950 = vcmp.lt.s32.totalorder %v949, %v796
    %v951 = vsel %vm950, %v949, %v796
    %vm952 = vcmp.lt.s32.totalorder %v951, %v800
    %v953 = vsel %vm952, %v951, %v800
    %vm954 = vcmp.lt.s32.totalorder %v953, %v804
    %v955 = vsel %vm954, %v953, %v804
    %vm956 = vcmp.lt.s32.totalorder %v955, %v808
    %v957 = vsel %vm956, %v955, %v808
    %vm958 = vcmp.lt.s32.totalorder %v957, %v812
    %v959 = vsel %vm958, %v957, %v812
    %v960 = vrot.slane %v959, 4
    %vm961 = vcmp.lt.s32.totalorder %v959, %v960
    %v962 = vsel %vm961, %v959, %v960
    %v963 = vrot.slane %v962, 2
    %vm964 = vcmp.lt.s32.totalorder %v962, %v963
    %v965 = vsel %vm964, %v962, %v963
    %v966 = vrot.slane %v965, 1
    %vm967 = vcmp.lt.s32.totalorder %v965, %v966
    %v968 = vsel %vm967, %v965, %v966
    %v969 = vcombine.low %v851, %v890
    %v970 = vcombine.low %v929, %v968
    %v972 = vunpack.c.l.s4 1966171168
    %v973 = vunpack.c.0.s8 %v972
    %v974 = vlaneseq
    %v975 = vshrl.u32 %v974, 7
    %v976 = vsub.s32 %v973, %v975
    %v977 = vrot.slane %v969, %v976
    %v979 = vunpack.c.l.s4 1966171168
    %v980 = vunpack.c.0.s8 %v979
    %v981 = vlaneseq
    %v982 = vshrl.u32 %v981, 7
    %v983 = vsub.s32 %v980, %v982
    %v984 = vrot.slane %v970, %v983
    %v985 = vcombine.low %v977, %v984
    %v987 = vunpack.c.l.s4 1966171168
    %v988 = vunpack.c.0.s8 %v987
    %v989 = vlaneseq
    %v990 = vshrl.u32 %v989, 7
    %v991 = vsub.s32 %v988, %v990
    %v992 = vrot.slane %v985, %v991
    %v993 = vlaneseq
    %vm994 = vcmp.ge.s32.totalorder %v993, 0
    %vm995 = vcmp.lt.s32.totalorder %v993, 512
    %vm996 = vmand %vm994, %vm995
    %997 = vst.msk [vmem:[%s5] sm:$0xf] %vm996, %v992
    %vm998 = vcmp.eq.s32.totalorder %v669, %v851
    %vm999 = vcmp.eq.s32.totalorder %v669, %v890
    %vm1000 = vcmp.eq.s32.totalorder %v669, %v929
    %vm1001 = vcmp.eq.s32.totalorder %v669, %v968
    %vm1002 = vcmp.eq.s32.totalorder %v670, %v851
    %vm1003 = vcmp.eq.s32.totalorder %v670, %v890
    %vm1004 = vcmp.eq.s32.totalorder %v670, %v929
    %vm1005 = vcmp.eq.s32.totalorder %v670, %v968
    %vm1006 = vcmp.eq.s32.totalorder %v671, %v851
    %vm1007 = vcmp.eq.s32.totalorder %v671, %v890
    %vm1008 = vcmp.eq.s32.totalorder %v671, %v929
    %vm1009 = vcmp.eq.s32.totalorder %v671, %v968
    %vm1010 = vcmp.eq.s32.totalorder %v672, %v851
    %vm1011 = vcmp.eq.s32.totalorder %v672, %v890
    %vm1012 = vcmp.eq.s32.totalorder %v672, %v929
    %vm1013 = vcmp.eq.s32.totalorder %v672, %v968
    %vm1014 = vcmp.eq.s32.totalorder %v673, %v851
    %vm1015 = vcmp.eq.s32.totalorder %v673, %v890
    %vm1016 = vcmp.eq.s32.totalorder %v673, %v929
    %vm1017 = vcmp.eq.s32.totalorder %v673, %v968
    %vm1018 = vcmp.eq.s32.totalorder %v674, %v851
    %vm1019 = vcmp.eq.s32.totalorder %v674, %v890
    %vm1020 = vcmp.eq.s32.totalorder %v674, %v929
    %vm1021 = vcmp.eq.s32.totalorder %v674, %v968
    %vm1022 = vcmp.eq.s32.totalorder %v675, %v851
    %vm1023 = vcmp.eq.s32.totalorder %v675, %v890
    %vm1024 = vcmp.eq.s32.totalorder %v675, %v929
    %vm1025 = vcmp.eq.s32.totalorder %v675, %v968
    %vm1026 = vcmp.eq.s32.totalorder %v676, %v851
    %vm1027 = vcmp.eq.s32.totalorder %v676, %v890
    %vm1028 = vcmp.eq.s32.totalorder %v676, %v929
    %vm1029 = vcmp.eq.s32.totalorder %v676, %v968
    %vm1030 = vcmp.eq.s32.totalorder %v677, %v851
    %vm1031 = vcmp.eq.s32.totalorder %v677, %v890
    %vm1032 = vcmp.eq.s32.totalorder %v677, %v929
    %vm1033 = vcmp.eq.s32.totalorder %v677, %v968
    %vm1034 = vcmp.eq.s32.totalorder %v678, %v851
    %vm1035 = vcmp.eq.s32.totalorder %v678, %v890
    %vm1036 = vcmp.eq.s32.totalorder %v678, %v929
    %vm1037 = vcmp.eq.s32.totalorder %v678, %v968
    %vm1038 = vcmp.eq.s32.totalorder %v679, %v851
    %vm1039 = vcmp.eq.s32.totalorder %v679, %v890
    %vm1040 = vcmp.eq.s32.totalorder %v679, %v929
    %vm1041 = vcmp.eq.s32.totalorder %v679, %v968
    %vm1042 = vcmp.eq.s32.totalorder %v680, %v851
    %vm1043 = vcmp.eq.s32.totalorder %v680, %v890
    %vm1044 = vcmp.eq.s32.totalorder %v680, %v929
    %vm1045 = vcmp.eq.s32.totalorder %v680, %v968
    %vm1046 = vcmp.eq.s32.totalorder %v681, %v851
    %vm1047 = vcmp.eq.s32.totalorder %v681, %v890
    %vm1048 = vcmp.eq.s32.totalorder %v681, %v929
    %vm1049 = vcmp.eq.s32.totalorder %v681, %v968
    %vm1050 = vcmp.eq.s32.totalorder %v682, %v851
    %vm1051 = vcmp.eq.s32.totalorder %v682, %v890
    %vm1052 = vcmp.eq.s32.totalorder %v682, %v929
    %vm1053 = vcmp.eq.s32.totalorder %v682, %v968
    %vm1054 = vcmp.eq.s32.totalorder %v683, %v851
    %vm1055 = vcmp.eq.s32.totalorder %v683, %v890
    %vm1056 = vcmp.eq.s32.totalorder %v683, %v929
    %vm1057 = vcmp.eq.s32.totalorder %v683, %v968
    %vm1058 = vcmp.eq.s32.totalorder %v684, %v851
    %vm1059 = vcmp.eq.s32.totalorder %v684, %v890
    %vm1060 = vcmp.eq.s32.totalorder %v684, %v929
    %vm1061 = vcmp.eq.s32.totalorder %v684, %v968
    %v1062 = vsel %vm998, 1, 0
    %v1063 = vsel %vm999, 1, 0
    %v1064 = vsel %vm1000, 1, 0
    %v1065 = vsel %vm1001, 1, 0
    %v1066 = vsel %vm1002, 1, 0
    %v1067 = vsel %vm1003, 1, 0
    %v1068 = vsel %vm1004, 1, 0
    %v1069 = vsel %vm1005, 1, 0
    %v1070 = vsel %vm1006, 1, 0
    %v1071 = vsel %vm1007, 1, 0
    %v1072 = vsel %vm1008, 1, 0
    %v1073 = vsel %vm1009, 1, 0
    %v1074 = vsel %vm1010, 1, 0
    %v1075 = vsel %vm1011, 1, 0
    %v1076 = vsel %vm1012, 1, 0
    %v1077 = vsel %vm1013, 1, 0
    %v1078 = vsel %vm1014, 1, 0
    %v1079 = vsel %vm1015, 1, 0
    %v1080 = vsel %vm1016, 1, 0
    %v1081 = vsel %vm1017, 1, 0
    %v1082 = vsel %vm1018, 1, 0
    %v1083 = vsel %vm1019, 1, 0
    %v1084 = vsel %vm1020, 1, 0
    %v1085 = vsel %vm1021, 1, 0
    %v1086 = vsel %vm1022, 1, 0
    %v1087 = vsel %vm1023, 1, 0
    %v1088 = vsel %vm1024, 1, 0
    %v1089 = vsel %vm1025, 1, 0
    %v1090 = vsel %vm1026, 1, 0
    %v1091 = vsel %vm1027, 1, 0
    %v1092 = vsel %vm1028, 1, 0
    %v1093 = vsel %vm1029, 1, 0
    %v1094 = vsel %vm1030, 1, 0
    %v1095 = vsel %vm1031, 1, 0
    %v1096 = vsel %vm1032, 1, 0
    %v1097 = vsel %vm1033, 1, 0
    %v1098 = vsel %vm1034, 1, 0
    %v1099 = vsel %vm1035, 1, 0
    %v1100 = vsel %vm1036, 1, 0
    %v1101 = vsel %vm1037, 1, 0
    %v1102 = vsel %vm1038, 1, 0
    %v1103 = vsel %vm1039, 1, 0
    %v1104 = vsel %vm1040, 1, 0
    %v1105 = vsel %vm1041, 1, 0
    %v1106 = vsel %vm1042, 1, 0
    %v1107 = vsel %vm1043, 1, 0
    %v1108 = vsel %vm1044, 1, 0
    %v1109 = vsel %vm1045, 1, 0
    %v1110 = vsel %vm1046, 1, 0
    %v1111 = vsel %vm1047, 1, 0
    %v1112 = vsel %vm1048, 1, 0
    %v1113 = vsel %vm1049, 1, 0
    %v1114 = vsel %vm1050, 1, 0
    %v1115 = vsel %vm1051, 1, 0
    %v1116 = vsel %vm1052, 1, 0
    %v1117 = vsel %vm1053, 1, 0
    %v1118 = vsel %vm1054, 1, 0
    %v1119 = vsel %vm1055, 1, 0
    %v1120 = vsel %vm1056, 1, 0
    %v1121 = vsel %vm1057, 1, 0
    %v1122 = vsel %vm1058, 1, 0
    %v1123 = vsel %vm1059, 1, 0
    %v1124 = vsel %vm1060, 1, 0
    %v1125 = vsel %vm1061, 1, 0
    %v1126 = vcvt.s32.f32 %v1062
    %v1127 = vcvt.s32.f32 %v1063
    %v1128 = vcvt.s32.f32 %v1064
    %v1129 = vcvt.s32.f32 %v1065
    %v1130 = vcvt.s32.f32 %v1066
    %v1131 = vcvt.s32.f32 %v1067
    %v1132 = vcvt.s32.f32 %v1068
    %v1133 = vcvt.s32.f32 %v1069
    %v1134 = vcvt.s32.f32 %v1070
    %v1135 = vcvt.s32.f32 %v1071
    %v1136 = vcvt.s32.f32 %v1072
    %v1137 = vcvt.s32.f32 %v1073
    %v1138 = vcvt.s32.f32 %v1074
    %v1139 = vcvt.s32.f32 %v1075
    %v1140 = vcvt.s32.f32 %v1076
    %v1141 = vcvt.s32.f32 %v1077
    %v1142 = vcvt.s32.f32 %v1078
    %v1143 = vcvt.s32.f32 %v1079
    %v1144 = vcvt.s32.f32 %v1080
    %v1145 = vcvt.s32.f32 %v1081
    %v1146 = vcvt.s32.f32 %v1082
    %v1147 = vcvt.s32.f32 %v1083
    %v1148 = vcvt.s32.f32 %v1084
    %v1149 = vcvt.s32.f32 %v1085
    %v1150 = vcvt.s32.f32 %v1086
    %v1151 = vcvt.s32.f32 %v1087
    %v1152 = vcvt.s32.f32 %v1088
    %v1153 = vcvt.s32.f32 %v1089
    %v1154 = vcvt.s32.f32 %v1090
    %v1155 = vcvt.s32.f32 %v1091
    %v1156 = vcvt.s32.f32 %v1092
    %v1157 = vcvt.s32.f32 %v1093
    %v1158 = vcvt.s32.f32 %v1094
    %v1159 = vcvt.s32.f32 %v1095
    %v1160 = vcvt.s32.f32 %v1096
    %v1161 = vcvt.s32.f32 %v1097
    %v1162 = vcvt.s32.f32 %v1098
    %v1163 = vcvt.s32.f32 %v1099
    %v1164 = vcvt.s32.f32 %v1100
    %v1165 = vcvt.s32.f32 %v1101
    %v1166 = vcvt.s32.f32 %v1102
    %v1167 = vcvt.s32.f32 %v1103
    %v1168 = vcvt.s32.f32 %v1104
    %v1169 = vcvt.s32.f32 %v1105
    %v1170 = vcvt.s32.f32 %v1106
    %v1171 = vcvt.s32.f32 %v1107
    %v1172 = vcvt.s32.f32 %v1108
    %v1173 = vcvt.s32.f32 %v1109
    %v1174 = vcvt.s32.f32 %v1110
    %v1175 = vcvt.s32.f32 %v1111
    %v1176 = vcvt.s32.f32 %v1112
    %v1177 = vcvt.s32.f32 %v1113
    %v1178 = vcvt.s32.f32 %v1114
    %v1179 = vcvt.s32.f32 %v1115
    %v1180 = vcvt.s32.f32 %v1116
    %v1181 = vcvt.s32.f32 %v1117
    %v1182 = vcvt.s32.f32 %v1118
    %v1183 = vcvt.s32.f32 %v1119
    %v1184 = vcvt.s32.f32 %v1120
    %v1185 = vcvt.s32.f32 %v1121
    %v1186 = vcvt.s32.f32 %v1122
    %v1187 = vcvt.s32.f32 %v1123
    %v1188 = vcvt.s32.f32 %v1124
    %v1189 = vcvt.s32.f32 %v1125
    %1190 = vmatprep.subr.mxu0 %v1187
    %1191 = vmatpush1.msra.mxu0 %v1186
    %1192 = vmatprep.subr.mxu0 %v1183
    %1193 = vmatpush1.msra.mxu0 %v1182
    %1194 = vmatprep.subr.mxu0 %v1179
    %1195 = vmatpush1.msra.mxu0 %v1178
    %1196 = vmatprep.subr.mxu0 %v1175
    %1197 = vmatpush1.msra.mxu0 %v1174
    %1198 = vmatprep.subr.mxu0 %v1171
    %1199 = vmatpush1.msra.mxu0 %v1170
    %1200 = vmatprep.subr.mxu0 %v1167
    %1201 = vmatpush1.msra.mxu0 %v1166
    %1202 = vmatprep.subr.mxu0 %v1163
    %1203 = vmatpush1.msra.mxu0 %v1162
    %1204 = vmatprep.subr.mxu0 %v1159
    %1205 = vmatpush1.msra.mxu0 %v1158
    %1206 = vmatprep.subr.mxu0 %v1155
    %1207 = vmatpush1.msra.mxu0 %v1154
    %1208 = vmatprep.subr.mxu0 %v1151
    %1209 = vmatpush1.msra.mxu0 %v1150
    %1210 = vmatprep.subr.mxu0 %v1147
    %1211 = vmatpush1.msra.mxu0 %v1146
    %1212 = vmatprep.subr.mxu0 %v1143
    %1213 = vmatpush1.msra.mxu0 %v1142
    %1214 = vmatprep.subr.mxu0 %v1139
    %1215 = vmatpush1.msra.mxu0 %v1138
    %1216 = vmatprep.subr.mxu0 %v1135
    %1217 = vmatpush1.msra.mxu0 %v1134
    %1218 = vmatprep.subr.mxu0 %v1131
    %1219 = vmatpush1.msra.mxu0 %v1130
    %1220 = vmatprep.subr.mxu0 %v1127
    %1221 = vmatpush1.msra.mxu0 %v1126
    %1222 = vmatprep.subr.mxu0 0.0
    %1223 = vmatpush2.msra.mxu0 0.0
    %1224 = vmatprep.subr.mxu0 0.0
    %1225 = vmatpush2.msra.mxu0 0.0
    %1226 = vmatprep.subr.mxu0 0.0
    %1227 = vmatpush2.msra.mxu0 0.0
    %1228 = vmatprep.subr.mxu0 0.0
    %1229 = vmatpush2.msra.mxu0 0.0
    %1230 = vmatprep.subr.mxu0 0.0
    %1231 = vmatpush2.msra.mxu0 0.0
    %1232 = vmatprep.subr.mxu0 0.0
    %1233 = vmatpush2.msra.mxu0 0.0
    %1234 = vmatprep.subr.mxu0 0.0
    %1235 = vmatpush2.msra.mxu0 0.0
    %1236 = vmatprep.subr.mxu0 0.0
    %1237 = vmatpush2.msra.mxu0 0.0
    %1238 = vmatprep.subr.mxu0 0.0
    %1239 = vmatpush2.msra.mxu0 0.0
    %1240 = vmatprep.subr.mxu0 0.0
    %1241 = vmatpush2.msra.mxu0 0.0
    %1242 = vmatprep.subr.mxu0 0.0
    %1243 = vmatpush2.msra.mxu0 0.0
    %1244 = vmatprep.subr.mxu0 0.0
    %1245 = vmatpush2.msra.mxu0 0.0
    %1246 = vmatprep.subr.mxu0 0.0
    %1247 = vmatpush2.msra.mxu0 0.0
    %1248 = vmatprep.subr.mxu0 0.0
    %1249 = vmatpush2.msra.mxu0 0.0
    %1250 = vmatprep.subr.mxu0 0.0
    %1251 = vmatpush2.msra.mxu0 0.0
    %1252 = vmatprep.subr.mxu0 0.0
    %1253 = vmatpush2.msra.mxu0 0.0
    %1254 = vmatprep.mubr.f32.mxu0 0.0
    %1255 = vmatmul.mubr.f32.gmra.mxu0 %v39
    %v1256 = vpop.f32.mrf.mxu0
    %v1257 = vadd.f32 0.0, %v1256
    %v1258 = vpop.f32.mrf.mxu0
    %v1259 = vadd.f32 0.0, %v1258
    %1260 = vdwg.mxu0
    %1261 = vmatprep.subr.mxu0 %v1189
    %1262 = vmatpush1.msra.mxu0 %v1188
    %1263 = vmatprep.subr.mxu0 %v1185
    %1264 = vmatpush1.msra.mxu0 %v1184
    %1265 = vmatprep.subr.mxu0 %v1181
    %1266 = vmatpush1.msra.mxu0 %v1180
    %1267 = vmatprep.subr.mxu0 %v1177
    %1268 = vmatpush1.msra.mxu0 %v1176
    %1269 = vmatprep.subr.mxu0 %v1173
    %1270 = vmatpush1.msra.mxu0 %v1172
    %1271 = vmatprep.subr.mxu0 %v1169
    %1272 = vmatpush1.msra.mxu0 %v1168
    %1273 = vmatprep.subr.mxu0 %v1165
    %1274 = vmatpush1.msra.mxu0 %v1164
    %1275 = vmatprep.subr.mxu0 %v1161
    %1276 = vmatpush1.msra.mxu0 %v1160
    %1277 = vmatprep.subr.mxu0 %v1157
    %1278 = vmatpush1.msra.mxu0 %v1156
    %1279 = vmatprep.subr.mxu0 %v1153
    %1280 = vmatpush1.msra.mxu0 %v1152
    %1281 = vmatprep.subr.mxu0 %v1149
    %1282 = vmatpush1.msra.mxu0 %v1148
    %1283 = vmatprep.subr.mxu0 %v1145
    %1284 = vmatpush1.msra.mxu0 %v1144
    %1285 = vmatprep.subr.mxu0 %v1141
    %1286 = vmatpush1.msra.mxu0 %v1140
    %1287 = vmatprep.subr.mxu0 %v1137
    %1288 = vmatpush1.msra.mxu0 %v1136
    %1289 = vmatprep.subr.mxu0 %v1133
    %1290 = vmatpush1.msra.mxu0 %v1132
    %1291 = vmatprep.subr.mxu0 %v1129
    %1292 = vmatpush1.msra.mxu0 %v1128
    %1293 = vmatprep.subr.mxu0 0.0
    %1294 = vmatpush2.msra.mxu0 0.0
    %1295 = vmatprep.subr.mxu0 0.0
    %1296 = vmatpush2.msra.mxu0 0.0
    %1297 = vmatprep.subr.mxu0 0.0
    %1298 = vmatpush2.msra.mxu0 0.0
    %1299 = vmatprep.subr.mxu0 0.0
    %1300 = vmatpush2.msra.mxu0 0.0
    %1301 = vmatprep.subr.mxu0 0.0
    %1302 = vmatpush2.msra.mxu0 0.0
    %1303 = vmatprep.subr.mxu0 0.0
    %1304 = vmatpush2.msra.mxu0 0.0
    %1305 = vmatprep.subr.mxu0 0.0
    %1306 = vmatpush2.msra.mxu0 0.0
    %1307 = vmatprep.subr.mxu0 0.0
    %1308 = vmatpush2.msra.mxu0 0.0
    %1309 = vmatprep.subr.mxu0 0.0
    %1310 = vmatpush2.msra.mxu0 0.0
    %1311 = vmatprep.subr.mxu0 0.0
    %1312 = vmatpush2.msra.mxu0 0.0
    %1313 = vmatprep.subr.mxu0 0.0
    %1314 = vmatpush2.msra.mxu0 0.0
    %1315 = vmatprep.subr.mxu0 0.0
    %1316 = vmatpush2.msra.mxu0 0.0
    %1317 = vmatprep.subr.mxu0 0.0
    %1318 = vmatpush2.msra.mxu0 0.0
    %1319 = vmatprep.subr.mxu0 0.0
    %1320 = vmatpush2.msra.mxu0 0.0
    %1321 = vmatprep.subr.mxu0 0.0
    %1322 = vmatpush2.msra.mxu0 0.0
    %1323 = vmatprep.subr.mxu0 0.0
    %1324 = vmatpush2.msra.mxu0 0.0
    %1325 = vmatprep.mubr.f32.mxu0 0.0
    %1326 = vmatmul.mubr.f32.gmra.mxu0 %v39
    %v1327 = vpop.f32.mrf.mxu0
    %v1328 = vadd.f32 0.0, %v1327
    %v1329 = vpop.f32.mrf.mxu0
    %v1330 = vadd.f32 0.0, %v1329
    %1331 = vdwg.mxu0
    %v1336 = vcombine.low %v1257, %v1259
    %v1337 = vcombine.low %v1328, %v1330
    %1340 = vst [vmem:[%s4] sm:$0xff] %v1336
    %1341 = vst [vmem:[%s4 + $0x8] sm:$0xff] %v1337
    %v1342 = vsub.f32 %v21, %v1336
    %v1343 = vsub.f32 %v22, %v1337
    %v1344 = vmul.f32 %v1342, %v1342
    %v1345 = vmul.f32 %v1343, %v1343
    %v1348 = vcombine.high %v1344, %v1344
    %v1349 = vcombine.high %v1345, %v1345
    %v1352 = vsel %vm109, %v1344, 0.0
    %v1353 = vsel %vm109, %v1348, 0.0
    %v1354 = vadd.f32 %v1352, %v1353
    %v1355 = vsel %vm109, %v1345, 0.0
    %v1356 = vadd.f32 %v1354, %v1355
    %v1357 = vsel %vm109, %v1349, 0.0
    %v1358 = vadd.f32 %v1356, %v1357
    %1359 = vadd.xlane.f32.xlu0 %v1358
    %v1360 = vpop.xlane.xlu0 %1359
    %v1361 = vrot.slane %v1360, 4
    %v1362 = vadd.f32 %v1360, %v1361
    %v1363 = vrot.slane %v1362, 2
    %v1364 = vadd.f32 %v1362, %v1363
    %v1365 = vrot.slane %v1364, 1
    %v1366 = vadd.f32 %v1364, %v1365
    %s1367 = vtos %v1366
    %v1368 = vstv %s1367
    %vm1369 = vcmask 0
    %1370 = vst.msk [vmem:[#allocation2] sm:$0x1] %vm1369, %v1368
    // Predicated region
    $region18: #{vector_quantizer_forward.1} parent=1 // pred_check
      _
    $region19: #{vector_quantizer_forward.1} parent=1 // pred_check_branch
      %1372 = sbr.rel (0) target = $region21
    $region20: #{vector_quantizer_forward.1} parent=1 // pred_region
      _
    $region21: #{vector_quantizer_forward.1} parent=1 // pred_fallthru
      _
    // Predicated region
    $region22: #{vector_quantizer_forward.1} parent=1 // pred_check
      _
    $region23: #{vector_quantizer_forward.1} parent=1 // pred_check_branch
      %1374 = sbr.rel (0) target = $region25
    $region24: #{vector_quantizer_forward.1} parent=1 // pred_region
      _
    $region25: #{vector_quantizer_forward.1} parent=1 // pred_fallthru
      _
    // Predicated region
    $region26: #{vector_quantizer_forward.1} parent=1 // pred_check
      _
    $region27: #{vector_quantizer_forward.1} parent=1 // pred_check_branch
      %1376 = sbr.rel (0) target = $region29
    $region28: #{vector_quantizer_forward.1} parent=1 // pred_region
      %s1378 = ssub.s32 16, 16
      %1379 = vsyncadd [#allocation3], %s1378
      %s1381 = sshll.u32 [#allocation2], 4
      %s1382 = int_to_ptr.vmem [resolvable:$true] %s1381
      %1384 = dma.vmem_to_hbm [thread:$0]  %s1382, 16, %s6, [#allocation3]
    $region29: #{vector_quantizer_forward.1} parent=1 // pred_fallthru
      _
    // Predicated region
    $region30: #{vector_quantizer_forward.1} parent=1 // pred_check
      _
    $region31: #{vector_quantizer_forward.1} parent=1 // pred_check_branch
      %1386 = sbr.rel (0) target = $region33
    $region32: #{vector_quantizer_forward.1} parent=1 // pred_region
      _
    $region33: #{vector_quantizer_forward.1} parent=1 // pred_fallthru
      _
    // Predicated region
    $region34: #{vector_quantizer_forward.1} parent=1 // pred_check
      _
    $region35: #{vector_quantizer_forward.1} parent=1 // pred_check_branch
      %1388 = sbr.rel (0) target = $region37
    $region36: #{vector_quantizer_forward.1} parent=1 // pred_region
      _
    $region37: #{vector_quantizer_forward.1} parent=1 // pred_fallthru
      _
    // Predicated region
    $region38: #{vector_quantizer_forward.1} parent=1 // pred_check
      _
    $region39: #{vector_quantizer_forward.1} parent=1 // pred_check_branch
      %1390 = sbr.rel (0) target = $region41
    $region40: #{vector_quantizer_forward.1} parent=1 // pred_region
      %1391 = dma.done [#allocation3], 16
    $region41: #{vector_quantizer_forward.1} parent=1 // pred_fallthru
      _
    %1392 = vsyncpa [#allocation3], 1

</llo_original>
